<compile_context>
chip_gen: v7x
topology: tpu7x:2x2x1
jax: 0.10.0
libtpu: 0.0.40
codegen_flags: <defaults>
</compile_context>

<pallas_src>
import numpy as np
import jax
import jax.numpy as jnp
from jax import lax
from jax.experimental import pallas as pl
from jax.experimental.pallas import tpu as pltpu


def _make_down_kernel(Nb, Cin, Cout, H2, W2, Wp, Lseg, GP, Wwin):
    """All static geometry captured in the closure.

    Per-image padded-flat layout: slot d = r*Wp + c, r in [0, H2+2), c in [0, W2+2);
    image n's block sits at window column n*Lseg + d; the window itself starts at ref
    lane GP (>= max |tap offset|), so every shifted lane-slice stays in bounds.
    """
    S2 = H2 * W2
    offs = [(dy - 1) * Wp + (dx - 1) for dy in range(3) for dx in range(3)]
    f32, bf16 = jnp.float32, jnp.bfloat16

    def kernel(x_ref, msk_ref, w1_ref, sh1_ref, w2_ref, sh2_ref, o_ref,
               pad1_ref, pad2_ref, im1_ref, im2_ref):
        # Re-zero the padded slabs every step so grid steps are fully independent
        # (safe under "parallel" megacore sharding); all other scratch is fully rewritten.
        pad1_ref[...] = jnp.zeros(pad1_ref.shape, bf16)
        pad2_ref[...] = jnp.zeros(pad2_ref.shape, bf16)

        # ---- MaxPool2d(2): pure VPU max over the 4 pre-split 2x2 phases ----
        xb = x_ref[...]                                                  # (Nb, 4, Cin, S2) f32
        pooled = jnp.maximum(jnp.maximum(xb[:, 0], xb[:, 1]),
                             jnp.maximum(xb[:, 2], xb[:, 3]))            # (Nb, Cin, S2) f32
        pooled = pooled.astype(bf16)

        # Scatter pooled rows into pad1's interior; the zero ring is conv1's padding.
        for n in range(Nb):
            for i in range(H2):
                dst = GP + n * Lseg + (i + 1) * Wp + 1
                pad1_ref[:, pl.ds(dst, W2)] = pooled[n, :, i * W2:(i + 1) * W2]

        # ---- Conv1: im2col (9 shifted lane-slices) + one bf16 MXU matmul (BN folded) ----
        for t in range(9):
            im1_ref[pl.ds(t * Cin, Cin), :] = pad1_ref[:, pl.ds(GP + offs[t], Wwin)]
        z1 = jnp.dot(w1_ref[...], im1_ref[...], preferred_element_type=f32)  # (Cout, Wwin)
        z1 = z1 + sh1_ref[...]
        z1 = jnp.where(z1 > 0, z1, 0.01 * z1)
        # Interior mask keeps the pad ring (and gaps) at exactly zero = conv2's padding.
        pad2_ref[:, pl.ds(GP, Wwin)] = (z1 * msk_ref[...]).astype(bf16)

        # ---- Conv2: same pattern ----
        for t in range(9):
            im2_ref[pl.ds(t * Cout, Cout), :] = pad2_ref[:, pl.ds(GP + offs[t], Wwin)]
        z2 = jnp.dot(w2_ref[...], im2_ref[...], preferred_element_type=f32)  # (Cout, Wwin)
        z2 = z2 + sh2_ref[...]
        z2 = jnp.where(z2 > 0, z2, 0.01 * z2)

        # ---- Assemble the lane-dense (Cout, Nb*S2) output slab via row copies ----
        for n in range(Nb):
            for i in range(H2):
                src = n * Lseg + (i + 1) * Wp + 1
                o_ref[:, pl.ds(n * S2 + i * W2, W2)] = (
                    z2[:, src:src + W2].astype(o_ref.dtype))

    return kernel


def down_forward(x, p):
    N, Cin, H, W = x.shape
    Cout = p['w1'].shape[0]
    assert H % 2 == 0 and W % 2 == 0
    H2, W2 = H // 2, W // 2
    S2 = H2 * W2
    Hp, Wp = H2 + 2, W2 + 2
    L = Hp * Wp
    guard = Wp + 1                      # max |flat tap offset|
    GP = -(-guard // 8) * 8             # lead/tail pad of the scratch slabs
    Lseg = -(-L // 8) * 8               # per-image segment stride on the lane axis

    # ---- batch blocking: how many images share one grid step (keep scratch modest) ----
    bytes_per_img = (2 * (Cin + Cout) * (Lseg + 2 * GP)       # padded slabs (bf16)
                     + 2 * 9 * (Cin + Cout) * Lseg            # im2col slabs (bf16)
                     + 2 * 4 * (4 * Cin + Cout) * S2)         # double-buffered x/out blocks (f32)
    cap = max(1, (24 * 2 ** 20) // max(bytes_per_img, 1))
    Nb = 1
    for d in range(1, N + 1):
        if N % d == 0 and d <= cap:
            Nb = d
    G = N // Nb
    Wwin = Nb * Lseg
    Tref = GP + Wwin + GP

    # ---- fold conv bias + eval-mode BN into the weights / a per-channel shift ----
    def fold(w, b, gamma, beta, mean, var, eps=1e-5):
        scale = gamma / jnp.sqrt(var + eps)                            # (Cout,)
        w_s = w * scale[:, None, None, None]                           # (Cout, Ci, 3, 3)
        w_mat = jnp.transpose(w_s, (0, 2, 3, 1)).reshape(w.shape[0], -1)  # (Cout, 9*Ci)
        shift = scale * (b - mean) + beta
        return w_mat.astype(jnp.bfloat16), shift.reshape(-1, 1).astype(jnp.float32)

    w1m, sh1 = fold(p['w1'], p['b1'], p['g1'], p['beta1'], p['m1'], p['v1'])
    w2m, sh2 = fold(p['w2'], p['b2'], p['g2'], p['beta2'], p['m2'], p['v2'])

    # interior mask over the compute window (1 at real pixels, 0 at pad ring / gaps)
    msk_np = np.zeros((1, Wwin), np.float32)
    for n in range(Nb):
        for i in range(H2):
            c0 = n * Lseg + (i + 1) * Wp + 1
            msk_np[0, c0:c0 + W2] = 1.0
    msk = jnp.asarray(msk_np)

    # split x into its four 2x2 pooling phases (layout plumbing; the max runs in-kernel)
    x_ph = (x.reshape(N, Cin, H2, 2, W2, 2)
             .transpose(0, 3, 5, 1, 2, 4)
             .reshape(N, 4, Cin, S2))

    kernel = _make_down_kernel(Nb, Cin, Cout, H2, W2, Wp, Lseg, GP, Wwin)

    out = pl.pallas_call(
        kernel,
        out_shape=jax.ShapeDtypeStruct((G, Cout, Nb * S2), x.dtype),
        grid=(G,),
        in_specs=[
            pl.BlockSpec((Nb, 4, Cin, S2), lambda g: (g, 0, 0, 0)),    # pooling phases
            pl.BlockSpec((1, Wwin), lambda g: (0, 0)),                 # interior mask
            pl.BlockSpec((Cout, 9 * Cin), lambda g: (0, 0)),           # conv1 weights (bf16)
            pl.BlockSpec((Cout, 1), lambda g: (0, 0)),                 # conv1 shift
            pl.BlockSpec((Cout, 9 * Cout), lambda g: (0, 0)),          # conv2 weights (bf16)
            pl.BlockSpec((Cout, 1), lambda g: (0, 0)),                 # conv2 shift
        ],
        out_specs=pl.BlockSpec((None, Cout, Nb * S2), lambda g: (g, 0, 0)),
        scratch_shapes=[
            pltpu.VMEM((Cin, Tref), jnp.bfloat16),       # padded pooled slab
            pltpu.VMEM((Cout, Tref), jnp.bfloat16),      # padded conv1 slab
            pltpu.VMEM((9 * Cin, Wwin), jnp.bfloat16),   # conv1 im2col slab
            pltpu.VMEM((9 * Cout, Wwin), jnp.bfloat16),  # conv2 im2col slab
        ],
        compiler_params=pltpu.CompilerParams(
            dimension_semantics=("parallel",),           # steps independent (v7x 2 TCs)
            vmem_limit_bytes=32 * 1024 * 1024,
        ),
    )(x_ph, msk, w1m, sh1, w2m, sh2)

    # (G, Cout, Nb*S2) slab -> (N, Cout, H2, W2)
    return (out.reshape(G, Cout, Nb, H2, W2)
               .transpose(0, 2, 1, 3, 4)
               .reshape(N, Cout, H2, W2))


def down_reference(x, p):
    """Pure-JAX f32 reference mirroring the PyTorch forward (eval-mode BN)."""
    xp = lax.reduce_window(x, -jnp.inf, lax.max, (1, 1, 2, 2), (1, 1, 2, 2), 'VALID')

    def conv_bn_lrelu(h, w, b, g, beta, m, v):
        z = lax.conv_general_dilated(h, w, (1, 1), ((1, 1), (1, 1)),
                                     dimension_numbers=('NCHW', 'OIHW', 'NCHW'))
        z = z + b[None, :, None, None]
        z = (g[None, :, None, None] * (z - m[None, :, None, None])
             / jnp.sqrt(v[None, :, None, None] + 1e-5) + beta[None, :, None, None])
        return jnp.where(z > 0, z, 0.01 * z)

    h = conv_bn_lrelu(xp, p['w1'], p['b1'], p['g1'], p['beta1'], p['m1'], p['v1'])
    h = conv_bn_lrelu(h, p['w2'], p['b2'], p['g2'], p['beta2'], p['m2'], p['v2'])
    return h


if __name__ == "__main__":
    N, Cin, Cout, H, W = 2, 4, 8, 16, 16
    key = jax.random.PRNGKey(0)
    ks = jax.random.split(key, 13)

    params = {
        'w1': 0.1 * jax.random.normal(ks[0], (Cout, Cin, 3, 3), jnp.float32),
        'b1': 0.05 * jax.random.normal(ks[1], (Cout,), jnp.float32),
        'g1': 1.0 + 0.1 * jax.random.normal(ks[2], (Cout,), jnp.float32),
        'beta1': 0.05 * jax.random.normal(ks[3], (Cout,), jnp.float32),
        'm1': 0.05 * jax.random.normal(ks[4], (Cout,), jnp.float32),
        'v1': 1.0 + 0.1 * jax.random.uniform(ks[5], (Cout,), jnp.float32),
        'w2': 0.1 * jax.random.normal(ks[6], (Cout, Cout, 3, 3), jnp.float32),
        'b2': 0.05 * jax.random.normal(ks[7], (Cout,), jnp.float32),
        'g2': 1.0 + 0.1 * jax.random.normal(ks[8], (Cout,), jnp.float32),
        'beta2': 0.05 * jax.random.normal(ks[9], (Cout,), jnp.float32),
        'm2': 0.05 * jax.random.normal(ks[10], (Cout,), jnp.float32),
        'v2': 1.0 + 0.1 * jax.random.uniform(ks[11], (Cout,), jnp.float32),
    }
    x = jax.random.normal(ks[12], (N, Cin, H, W), jnp.float32)

    out = jax.block_until_ready(down_forward(x, params))
    ref = jax.block_until_ready(down_reference(x, params))

    assert out.shape == (N, Cout, H // 2, W // 2), out.shape
    max_err = float(jnp.max(jnp.abs(out - ref)))
    # bf16 MXU inputs (f32 accumulation) -> relaxed tolerance vs the f32 reference.
    assert max_err < 5e-2, f"mismatch vs reference: max abs err = {max_err}"
    print("KERNEL_OK")
</pallas_src>

<mosaic_0001>
module attributes {stable_mosaic.version = 11 : i64} {
  func.func @kernel(%arg0: i32, %arg1: memref<2x4x4x64xf32, #tpu.memory_space<vmem>>, %arg2: memref<1x208xf32, #tpu.memory_space<vmem>>, %arg3: memref<8x36xbf16, #tpu.memory_space<vmem>>, %arg4: memref<8x1xf32, #tpu.memory_space<vmem>>, %arg5: memref<8x72xbf16, #tpu.memory_space<vmem>>, %arg6: memref<8x1xf32, #tpu.memory_space<vmem>>, %arg7: memref<1x8x128xf32, #tpu.memory_space<vmem>>, %arg8: memref<4x240xbf16, #tpu.memory_space<vmem>>, %arg9: memref<8x240xbf16, #tpu.memory_space<vmem>>, %arg10: memref<36x208xbf16, #tpu.memory_space<vmem>>, %arg11: memref<72x208xbf16, #tpu.memory_space<vmem>>) attributes {dimension_semantics = [#tpu.dimension_semantics<parallel>], iteration_bounds = array<i64: 1>, scalar_prefetch = 0 : i64, scratch_operands = 4 : i64, tpu.core_type = #tpu.core_type<tc>, window_params = [{transform_indices = @transform_0, window_bounds = array<i64: 2, 4, 4, 64>}, {pipeline_mode = #tpu.pipeline_mode<synchronous>, transform_indices = @transform_1, window_bounds = array<i64: 1, 208>}, {pipeline_mode = #tpu.pipeline_mode<synchronous>, transform_indices = @transform_2, window_bounds = array<i64: 8, 36>}, {pipeline_mode = #tpu.pipeline_mode<synchronous>, transform_indices = @transform_3, window_bounds = array<i64: 8, 1>}, {pipeline_mode = #tpu.pipeline_mode<synchronous>, transform_indices = @transform_4, window_bounds = array<i64: 8, 72>}, {pipeline_mode = #tpu.pipeline_mode<synchronous>, transform_indices = @transform_5, window_bounds = array<i64: 8, 1>}, {transform_indices = @transform_6, window_bounds = array<i64: 1, 8, 128>}]} {
    %cst = arith.constant 0.000000e+00 : bf16
    %0 = vector.broadcast %cst : bf16 to vector<4x240xbf16>
    %c0 = arith.constant 0 : index
    %c0_0 = arith.constant 0 : index
    %1 = vector.load %arg8[%c0, %c0_0] : memref<4x240xbf16, #tpu.memory_space<vmem>>, vector<4x240xbf16>
    tpu.vector_store %arg8[%c0, %c0_0], %0 {strides = array<i32>} : memref<4x240xbf16, #tpu.memory_space<vmem>>, vector<4x240xbf16>,
    %cst_1 = arith.constant 0.000000e+00 : bf16
    %2 = vector.broadcast %cst_1 : bf16 to vector<8x240xbf16>
    %c0_2 = arith.constant 0 : index
    %c0_3 = arith.constant 0 : index
    %3 = vector.load %arg9[%c0_2, %c0_3] : memref<8x240xbf16, #tpu.memory_space<vmem>>, vector<8x240xbf16>
    tpu.vector_store %arg9[%c0_2, %c0_3], %2 {strides = array<i32>} : memref<8x240xbf16, #tpu.memory_space<vmem>>, vector<8x240xbf16>,
    %c0_4 = arith.constant 0 : index
    %c0_5 = arith.constant 0 : index
    %c0_6 = arith.constant 0 : index
    %c0_7 = arith.constant 0 : index
    %4 = vector.load %arg1[%c0_4, %c0_5, %c0_6, %c0_7] : memref<2x4x4x64xf32, #tpu.memory_space<vmem>>, vector<2x4x4x64xf32>
    %5 = vector.extract_strided_slice %4 {offsets = [0, 0, 0, 0], sizes = [2, 1, 4, 64], strides = [1, 1, 1, 1]} : vector<2x4x4x64xf32> to vector<2x1x4x64xf32>
    %6 = vector.shape_cast %5 : vector<2x1x4x64xf32> to vector<2x4x64xf32>
    %7 = vector.extract_strided_slice %4 {offsets = [0, 1, 0, 0], sizes = [2, 1, 4, 64], strides = [1, 1, 1, 1]} : vector<2x4x4x64xf32> to vector<2x1x4x64xf32>
    %8 = vector.shape_cast %7 : vector<2x1x4x64xf32> to vector<2x4x64xf32>
    %9 = arith.maximumf %6, %8 : vector<2x4x64xf32>
    %10 = vector.extract_strided_slice %4 {offsets = [0, 2, 0, 0], sizes = [2, 1, 4, 64], strides = [1, 1, 1, 1]} : vector<2x4x4x64xf32> to vector<2x1x4x64xf32>
    %11 = vector.shape_cast %10 : vector<2x1x4x64xf32> to vector<2x4x64xf32>
    %12 = vector.extract_strided_slice %4 {offsets = [0, 3, 0, 0], sizes = [2, 1, 4, 64], strides = [1, 1, 1, 1]} : vector<2x4x4x64xf32> to vector<2x1x4x64xf32>
    %13 = vector.shape_cast %12 : vector<2x1x4x64xf32> to vector<2x4x64xf32>
    %14 = arith.maximumf %11, %13 : vector<2x4x64xf32>
    %15 = arith.maximumf %9, %14 : vector<2x4x64xf32>
    %16 = arith.truncf %15 : vector<2x4x64xf32> to vector<2x4x64xbf16>
    %17 = vector.extract_strided_slice %16 {offsets = [0, 0, 0], sizes = [1, 4, 8], strides = [1, 1, 1]} : vector<2x4x64xbf16> to vector<1x4x8xbf16>
    %18 = vector.shape_cast %17 : vector<1x4x8xbf16> to vector<4x8xbf16>
    %c0_8 = arith.constant 0 : index
    %c27 = arith.constant 27 : index
    %19 = vector.load %arg8[%c0_8, %c27] : memref<4x240xbf16, #tpu.memory_space<vmem>>, vector<4x8xbf16>
    tpu.vector_store %arg8[%c0_8, %c27], %18 {strides = array<i32>} : memref<4x240xbf16, #tpu.memory_space<vmem>>, vector<4x8xbf16>,
    %20 = vector.extract_strided_slice %16 {offsets = [0, 0, 8], sizes = [1, 4, 8], strides = [1, 1, 1]} : vector<2x4x64xbf16> to vector<1x4x8xbf16>
    %21 = vector.shape_cast %20 : vector<1x4x8xbf16> to vector<4x8xbf16>
    %c0_9 = arith.constant 0 : index
    %c37 = arith.constant 37 : index
    %22 = vector.load %arg8[%c0_9, %c37] : memref<4x240xbf16, #tpu.memory_space<vmem>>, vector<4x8xbf16>
    tpu.vector_store %arg8[%c0_9, %c37], %21 {strides = array<i32>} : memref<4x240xbf16, #tpu.memory_space<vmem>>, vector<4x8xbf16>,
    %23 = vector.extract_strided_slice %16 {offsets = [0, 0, 16], sizes = [1, 4, 8], strides = [1, 1, 1]} : vector<2x4x64xbf16> to vector<1x4x8xbf16>
    %24 = vector.shape_cast %23 : vector<1x4x8xbf16> to vector<4x8xbf16>
    %c0_10 = arith.constant 0 : index
    %c47 = arith.constant 47 : index
    %25 = vector.load %arg8[%c0_10, %c47] : memref<4x240xbf16, #tpu.memory_space<vmem>>, vector<4x8xbf16>
    tpu.vector_store %arg8[%c0_10, %c47], %24 {strides = array<i32>} : memref<4x240xbf16, #tpu.memory_space<vmem>>, vector<4x8xbf16>,
    %26 = vector.extract_strided_slice %16 {offsets = [0, 0, 24], sizes = [1, 4, 8], strides = [1, 1, 1]} : vector<2x4x64xbf16> to vector<1x4x8xbf16>
    %27 = vector.shape_cast %26 : vector<1x4x8xbf16> to vector<4x8xbf16>
    %c0_11 = arith.constant 0 : index
    %c57 = arith.constant 57 : index
    %28 = vector.load %arg8[%c0_11, %c57] : memref<4x240xbf16, #tpu.memory_space<vmem>>, vector<4x8xbf16>
    tpu.vector_store %arg8[%c0_11, %c57], %27 {strides = array<i32>} : memref<4x240xbf16, #tpu.memory_space<vmem>>, vector<4x8xbf16>,
    %29 = vector.extract_strided_slice %16 {offsets = [0, 0, 32], sizes = [1, 4, 8], strides = [1, 1, 1]} : vector<2x4x64xbf16> to vector<1x4x8xbf16>
    %30 = vector.shape_cast %29 : vector<1x4x8xbf16> to vector<4x8xbf16>
    %c0_12 = arith.constant 0 : index
    %c67 = arith.constant 67 : index
    %31 = vector.load %arg8[%c0_12, %c67] : memref<4x240xbf16, #tpu.memory_space<vmem>>, vector<4x8xbf16>
    tpu.vector_store %arg8[%c0_12, %c67], %30 {strides = array<i32>} : memref<4x240xbf16, #tpu.memory_space<vmem>>, vector<4x8xbf16>,
    %32 = vector.extract_strided_slice %16 {offsets = [0, 0, 40], sizes = [1, 4, 8], strides = [1, 1, 1]} : vector<2x4x64xbf16> to vector<1x4x8xbf16>
    %33 = vector.shape_cast %32 : vector<1x4x8xbf16> to vector<4x8xbf16>
    %c0_13 = arith.constant 0 : index
    %c77 = arith.constant 77 : index
    %34 = vector.load %arg8[%c0_13, %c77] : memref<4x240xbf16, #tpu.memory_space<vmem>>, vector<4x8xbf16>
    tpu.vector_store %arg8[%c0_13, %c77], %33 {strides = array<i32>} : memref<4x240xbf16, #tpu.memory_space<vmem>>, vector<4x8xbf16>,
    %35 = vector.extract_strided_slice %16 {offsets = [0, 0, 48], sizes = [1, 4, 8], strides = [1, 1, 1]} : vector<2x4x64xbf16> to vector<1x4x8xbf16>
    %36 = vector.shape_cast %35 : vector<1x4x8xbf16> to vector<4x8xbf16>
    %c0_14 = arith.constant 0 : index
    %c87 = arith.constant 87 : index
    %37 = vector.load %arg8[%c0_14, %c87] : memref<4x240xbf16, #tpu.memory_space<vmem>>, vector<4x8xbf16>
    tpu.vector_store %arg8[%c0_14, %c87], %36 {strides = array<i32>} : memref<4x240xbf16, #tpu.memory_space<vmem>>, vector<4x8xbf16>,
    %38 = vector.extract_strided_slice %16 {offsets = [0, 0, 56], sizes = [1, 4, 8], strides = [1, 1, 1]} : vector<2x4x64xbf16> to vector<1x4x8xbf16>
    %39 = vector.shape_cast %38 : vector<1x4x8xbf16> to vector<4x8xbf16>
    %c0_15 = arith.constant 0 : index
    %c97 = arith.constant 97 : index
    %40 = vector.load %arg8[%c0_15, %c97] : memref<4x240xbf16, #tpu.memory_space<vmem>>, vector<4x8xbf16>
    tpu.vector_store %arg8[%c0_15, %c97], %39 {strides = array<i32>} : memref<4x240xbf16, #tpu.memory_space<vmem>>, vector<4x8xbf16>,
    %41 = vector.extract_strided_slice %16 {offsets = [1, 0, 0], sizes = [1, 4, 8], strides = [1, 1, 1]} : vector<2x4x64xbf16> to vector<1x4x8xbf16>
    %42 = vector.shape_cast %41 : vector<1x4x8xbf16> to vector<4x8xbf16>
    %c0_16 = arith.constant 0 : index
    %c131 = arith.constant 131 : index
    %43 = vector.load %arg8[%c0_16, %c131] : memref<4x240xbf16, #tpu.memory_space<vmem>>, vector<4x8xbf16>
    tpu.vector_store %arg8[%c0_16, %c131], %42 {strides = array<i32>} : memref<4x240xbf16, #tpu.memory_space<vmem>>, vector<4x8xbf16>,
    %44 = vector.extract_strided_slice %16 {offsets = [1, 0, 8], sizes = [1, 4, 8], strides = [1, 1, 1]} : vector<2x4x64xbf16> to vector<1x4x8xbf16>
    %45 = vector.shape_cast %44 : vector<1x4x8xbf16> to vector<4x8xbf16>
    %c0_17 = arith.constant 0 : index
    %c141 = arith.constant 141 : index
    %46 = vector.load %arg8[%c0_17, %c141] : memref<4x240xbf16, #tpu.memory_space<vmem>>, vector<4x8xbf16>
    tpu.vector_store %arg8[%c0_17, %c141], %45 {strides = array<i32>} : memref<4x240xbf16, #tpu.memory_space<vmem>>, vector<4x8xbf16>,
    %47 = vector.extract_strided_slice %16 {offsets = [1, 0, 16], sizes = [1, 4, 8], strides = [1, 1, 1]} : vector<2x4x64xbf16> to vector<1x4x8xbf16>
    %48 = vector.shape_cast %47 : vector<1x4x8xbf16> to vector<4x8xbf16>
    %c0_18 = arith.constant 0 : index
    %c151 = arith.constant 151 : index
    %49 = vector.load %arg8[%c0_18, %c151] : memref<4x240xbf16, #tpu.memory_space<vmem>>, vector<4x8xbf16>
    tpu.vector_store %arg8[%c0_18, %c151], %48 {strides = array<i32>} : memref<4x240xbf16, #tpu.memory_space<vmem>>, vector<4x8xbf16>,
    %50 = vector.extract_strided_slice %16 {offsets = [1, 0, 24], sizes = [1, 4, 8], strides = [1, 1, 1]} : vector<2x4x64xbf16> to vector<1x4x8xbf16>
    %51 = vector.shape_cast %50 : vector<1x4x8xbf16> to vector<4x8xbf16>
    %c0_19 = arith.constant 0 : index
    %c161 = arith.constant 161 : index
    %52 = vector.load %arg8[%c0_19, %c161] : memref<4x240xbf16, #tpu.memory_space<vmem>>, vector<4x8xbf16>
    tpu.vector_store %arg8[%c0_19, %c161], %51 {strides = array<i32>} : memref<4x240xbf16, #tpu.memory_space<vmem>>, vector<4x8xbf16>,
    %53 = vector.extract_strided_slice %16 {offsets = [1, 0, 32], sizes = [1, 4, 8], strides = [1, 1, 1]} : vector<2x4x64xbf16> to vector<1x4x8xbf16>
    %54 = vector.shape_cast %53 : vector<1x4x8xbf16> to vector<4x8xbf16>
    %c0_20 = arith.constant 0 : index
    %c171 = arith.constant 171 : index
    %55 = vector.load %arg8[%c0_20, %c171] : memref<4x240xbf16, #tpu.memory_space<vmem>>, vector<4x8xbf16>
    tpu.vector_store %arg8[%c0_20, %c171], %54 {strides = array<i32>} : memref<4x240xbf16, #tpu.memory_space<vmem>>, vector<4x8xbf16>,
    %56 = vector.extract_strided_slice %16 {offsets = [1, 0, 40], sizes = [1, 4, 8], strides = [1, 1, 1]} : vector<2x4x64xbf16> to vector<1x4x8xbf16>
    %57 = vector.shape_cast %56 : vector<1x4x8xbf16> to vector<4x8xbf16>
    %c0_21 = arith.constant 0 : index
    %c181 = arith.constant 181 : index
    %58 = vector.load %arg8[%c0_21, %c181] : memref<4x240xbf16, #tpu.memory_space<vmem>>, vector<4x8xbf16>
    tpu.vector_store %arg8[%c0_21, %c181], %57 {strides = array<i32>} : memref<4x240xbf16, #tpu.memory_space<vmem>>, vector<4x8xbf16>,
    %59 = vector.extract_strided_slice %16 {offsets = [1, 0, 48], sizes = [1, 4, 8], strides = [1, 1, 1]} : vector<2x4x64xbf16> to vector<1x4x8xbf16>
    %60 = vector.shape_cast %59 : vector<1x4x8xbf16> to vector<4x8xbf16>
    %c0_22 = arith.constant 0 : index
    %c191 = arith.constant 191 : index
    %61 = vector.load %arg8[%c0_22, %c191] : memref<4x240xbf16, #tpu.memory_space<vmem>>, vector<4x8xbf16>
    tpu.vector_store %arg8[%c0_22, %c191], %60 {strides = array<i32>} : memref<4x240xbf16, #tpu.memory_space<vmem>>, vector<4x8xbf16>,
    %62 = vector.extract_strided_slice %16 {offsets = [1, 0, 56], sizes = [1, 4, 8], strides = [1, 1, 1]} : vector<2x4x64xbf16> to vector<1x4x8xbf16>
    %63 = vector.shape_cast %62 : vector<1x4x8xbf16> to vector<4x8xbf16>
    %c0_23 = arith.constant 0 : index
    %c201 = arith.constant 201 : index
    %64 = vector.load %arg8[%c0_23, %c201] : memref<4x240xbf16, #tpu.memory_space<vmem>>, vector<4x8xbf16>
    tpu.vector_store %arg8[%c0_23, %c201], %63 {strides = array<i32>} : memref<4x240xbf16, #tpu.memory_space<vmem>>, vector<4x8xbf16>,
    %c0_24 = arith.constant 0 : index
    %c5 = arith.constant 5 : index
    %65 = vector.load %arg8[%c0_24, %c5] : memref<4x240xbf16, #tpu.memory_space<vmem>>, vector<4x208xbf16>
    %c0_25 = arith.constant 0 : index
    %c0_26 = arith.constant 0 : index
    %66 = vector.load %arg10[%c0_25, %c0_26] : memref<36x208xbf16, #tpu.memory_space<vmem>>, vector<4x208xbf16>
    tpu.vector_store %arg10[%c0_25, %c0_26], %65 {strides = array<i32>} : memref<36x208xbf16, #tpu.memory_space<vmem>>, vector<4x208xbf16>,
    %c0_27 = arith.constant 0 : index
    %c6 = arith.constant 6 : index
    %67 = vector.load %arg8[%c0_27, %c6] : memref<4x240xbf16, #tpu.memory_space<vmem>>, vector<4x208xbf16>
    %c4 = arith.constant 4 : index
    %c0_28 = arith.constant 0 : index
    %68 = vector.load %arg10[%c4, %c0_28] : memref<36x208xbf16, #tpu.memory_space<vmem>>, vector<4x208xbf16>
    tpu.vector_store %arg10[%c4, %c0_28], %67 {strides = array<i32>} : memref<36x208xbf16, #tpu.memory_space<vmem>>, vector<4x208xbf16>,
    %c0_29 = arith.constant 0 : index
    %c7 = arith.constant 7 : index
    %69 = vector.load %arg8[%c0_29, %c7] : memref<4x240xbf16, #tpu.memory_space<vmem>>, vector<4x208xbf16>
    %c8 = arith.constant 8 : index
    %c0_30 = arith.constant 0 : index
    %70 = vector.load %arg10[%c8, %c0_30] : memref<36x208xbf16, #tpu.memory_space<vmem>>, vector<4x208xbf16>
    tpu.vector_store %arg10[%c8, %c0_30], %69 {strides = array<i32>} : memref<36x208xbf16, #tpu.memory_space<vmem>>, vector<4x208xbf16>,
    %c0_31 = arith.constant 0 : index
    %c15 = arith.constant 15 : index
    %71 = vector.load %arg8[%c0_31, %c15] : memref<4x240xbf16, #tpu.memory_space<vmem>>, vector<4x208xbf16>
    %c12 = arith.constant 12 : index
    %c0_32 = arith.constant 0 : index
    %72 = vector.load %arg10[%c12, %c0_32] : memref<36x208xbf16, #tpu.memory_space<vmem>>, vector<4x208xbf16>
    tpu.vector_store %arg10[%c12, %c0_32], %71 {strides = array<i32>} : memref<36x208xbf16, #tpu.memory_space<vmem>>, vector<4x208xbf16>,
    %c0_33 = arith.constant 0 : index
    %c16 = arith.constant 16 : index
    %73 = vector.load %arg8[%c0_33, %c16] : memref<4x240xbf16, #tpu.memory_space<vmem>>, vector<4x208xbf16>
    %c16_34 = arith.constant 16 : index
    %c0_35 = arith.constant 0 : index
    %74 = vector.load %arg10[%c16_34, %c0_35] : memref<36x208xbf16, #tpu.memory_space<vmem>>, vector<4x208xbf16>
    tpu.vector_store %arg10[%c16_34, %c0_35], %73 {strides = array<i32>} : memref<36x208xbf16, #tpu.memory_space<vmem>>, vector<4x208xbf16>,
    %c0_36 = arith.constant 0 : index
    %c17 = arith.constant 17 : index
    %75 = vector.load %arg8[%c0_36, %c17] : memref<4x240xbf16, #tpu.memory_space<vmem>>, vector<4x208xbf16>
    %c20 = arith.constant 20 : index
    %c0_37 = arith.constant 0 : index
    %76 = vector.load %arg10[%c20, %c0_37] : memref<36x208xbf16, #tpu.memory_space<vmem>>, vector<4x208xbf16>
    tpu.vector_store %arg10[%c20, %c0_37], %75 {strides = array<i32>} : memref<36x208xbf16, #tpu.memory_space<vmem>>, vector<4x208xbf16>,
    %c0_38 = arith.constant 0 : index
    %c25 = arith.constant 25 : index
    %77 = vector.load %arg8[%c0_38, %c25] : memref<4x240xbf16, #tpu.memory_space<vmem>>, vector<4x208xbf16>
    %c24 = arith.constant 24 : index
    %c0_39 = arith.constant 0 : index
    %78 = vector.load %arg10[%c24, %c0_39] : memref<36x208xbf16, #tpu.memory_space<vmem>>, vector<4x208xbf16>
    tpu.vector_store %arg10[%c24, %c0_39], %77 {strides = array<i32>} : memref<36x208xbf16, #tpu.memory_space<vmem>>, vector<4x208xbf16>,
    %c0_40 = arith.constant 0 : index
    %c26 = arith.constant 26 : index
    %79 = vector.load %arg8[%c0_40, %c26] : memref<4x240xbf16, #tpu.memory_space<vmem>>, vector<4x208xbf16>
    %c28 = arith.constant 28 : index
    %c0_41 = arith.constant 0 : index
    %80 = vector.load %arg10[%c28, %c0_41] : memref<36x208xbf16, #tpu.memory_space<vmem>>, vector<4x208xbf16>
    tpu.vector_store %arg10[%c28, %c0_41], %79 {strides = array<i32>} : memref<36x208xbf16, #tpu.memory_space<vmem>>, vector<4x208xbf16>,
    %c0_42 = arith.constant 0 : index
    %c27_43 = arith.constant 27 : index
    %81 = vector.load %arg8[%c0_42, %c27_43] : memref<4x240xbf16, #tpu.memory_space<vmem>>, vector<4x208xbf16>
    %c32 = arith.constant 32 : index
    %c0_44 = arith.constant 0 : index
    %82 = vector.load %arg10[%c32, %c0_44] : memref<36x208xbf16, #tpu.memory_space<vmem>>, vector<4x208xbf16>
    tpu.vector_store %arg10[%c32, %c0_44], %81 {strides = array<i32>} : memref<36x208xbf16, #tpu.memory_space<vmem>>, vector<4x208xbf16>,
    %c0_45 = arith.constant 0 : index
    %c0_46 = arith.constant 0 : index
    %83 = vector.load %arg3[%c0_45, %c0_46] : memref<8x36xbf16, #tpu.memory_space<vmem>>, vector<8x36xbf16>
    %c0_47 = arith.constant 0 : index
    %c0_48 = arith.constant 0 : index
    %84 = vector.load %arg10[%c0_47, %c0_48] : memref<36x208xbf16, #tpu.memory_space<vmem>>, vector<36x208xbf16>
    %cst_49 = arith.constant dense<0.000000e+00> : vector<8x208xf32>
    %85 = tpu.matmul %83, %84, %cst_49 {dimension_numbers = #tpu.dot_dimension_numbers<[1], [0], [0], [1], [0, 0, 1, 1], [], []>} : vector<8x36xbf16>, vector<36x208xbf16>, vector<8x208xf32> -> vector<8x208xf32>
    %c0_50 = arith.constant 0 : index
    %c0_51 = arith.constant 0 : index
    %86 = vector.load %arg4[%c0_50, %c0_51] : memref<8x1xf32, #tpu.memory_space<vmem>>, vector<8x1xf32>
    %87 = vector.broadcast %86 : vector<8x1xf32> to vector<8x208xf32>
    %88 = arith.addf %85, %87 : vector<8x208xf32>
    %cst_52 = arith.constant 0.000000e+00 : f32
    %89 = vector.broadcast %cst_52 : f32 to vector<8x208xf32>
    %90 = arith.cmpf ogt, %88, %89 : vector<8x208xf32>
    %cst_53 = arith.constant 0.00999999977 : f32
    %91 = vector.broadcast %cst_53 : f32 to vector<8x208xf32>
    %92 = arith.mulf %91, %88 : vector<8x208xf32>
    %93 = arith.select %90, %88, %92 : vector<8x208xi1>, vector<8x208xf32>
    %c0_54 = arith.constant 0 : index
    %c0_55 = arith.constant 0 : index
    %94 = vector.load %arg2[%c0_54, %c0_55] : memref<1x208xf32, #tpu.memory_space<vmem>>, vector<1x208xf32>
    %95 = vector.broadcast %94 : vector<1x208xf32> to vector<8x208xf32>
    %96 = arith.mulf %93, %95 : vector<8x208xf32>
    %97 = arith.truncf %96 : vector<8x208xf32> to vector<8x208xbf16>
    %c0_56 = arith.constant 0 : index
    %c16_57 = arith.constant 16 : index
    %98 = vector.load %arg9[%c0_56, %c16_57] : memref<8x240xbf16, #tpu.memory_space<vmem>>, vector<8x208xbf16>
    tpu.vector_store %arg9[%c0_56, %c16_57], %97 {strides = array<i32>} : memref<8x240xbf16, #tpu.memory_space<vmem>>, vector<8x208xbf16>,
    %c0_58 = arith.constant 0 : index
    %c5_59 = arith.constant 5 : index
    %99 = vector.load %arg9[%c0_58, %c5_59] : memref<8x240xbf16, #tpu.memory_space<vmem>>, vector<8x208xbf16>
    %c0_60 = arith.constant 0 : index
    %c0_61 = arith.constant 0 : index
    %100 = vector.load %arg11[%c0_60, %c0_61] : memref<72x208xbf16, #tpu.memory_space<vmem>>, vector<8x208xbf16>
    tpu.vector_store %arg11[%c0_60, %c0_61], %99 {strides = array<i32>} : memref<72x208xbf16, #tpu.memory_space<vmem>>, vector<8x208xbf16>,
    %c0_62 = arith.constant 0 : index
    %c6_63 = arith.constant 6 : index
    %101 = vector.load %arg9[%c0_62, %c6_63] : memref<8x240xbf16, #tpu.memory_space<vmem>>, vector<8x208xbf16>
    %c8_64 = arith.constant 8 : index
    %c0_65 = arith.constant 0 : index
    %102 = vector.load %arg11[%c8_64, %c0_65] : memref<72x208xbf16, #tpu.memory_space<vmem>>, vector<8x208xbf16>
    tpu.vector_store %arg11[%c8_64, %c0_65], %101 {strides = array<i32>} : memref<72x208xbf16, #tpu.memory_space<vmem>>, vector<8x208xbf16>,
    %c0_66 = arith.constant 0 : index
    %c7_67 = arith.constant 7 : index
    %103 = vector.load %arg9[%c0_66, %c7_67] : memref<8x240xbf16, #tpu.memory_space<vmem>>, vector<8x208xbf16>
    %c16_68 = arith.constant 16 : index
    %c0_69 = arith.constant 0 : index
    %104 = vector.load %arg11[%c16_68, %c0_69] : memref<72x208xbf16, #tpu.memory_space<vmem>>, vector<8x208xbf16>
    tpu.vector_store %arg11[%c16_68, %c0_69], %103 {strides = array<i32>} : memref<72x208xbf16, #tpu.memory_space<vmem>>, vector<8x208xbf16>,
    %c0_70 = arith.constant 0 : index
    %c15_71 = arith.constant 15 : index
    %105 = vector.load %arg9[%c0_70, %c15_71] : memref<8x240xbf16, #tpu.memory_space<vmem>>, vector<8x208xbf16>
    %c24_72 = arith.constant 24 : index
    %c0_73 = arith.constant 0 : index
    %106 = vector.load %arg11[%c24_72, %c0_73] : memref<72x208xbf16, #tpu.memory_space<vmem>>, vector<8x208xbf16>
    tpu.vector_store %arg11[%c24_72, %c0_73], %105 {strides = array<i32>} : memref<72x208xbf16, #tpu.memory_space<vmem>>, vector<8x208xbf16>,
    %c0_74 = arith.constant 0 : index
    %c16_75 = arith.constant 16 : index
    %107 = vector.load %arg9[%c0_74, %c16_75] : memref<8x240xbf16, #tpu.memory_space<vmem>>, vector<8x208xbf16>
    %c32_76 = arith.constant 32 : index
    %c0_77 = arith.constant 0 : index
    %108 = vector.load %arg11[%c32_76, %c0_77] : memref<72x208xbf16, #tpu.memory_space<vmem>>, vector<8x208xbf16>
    tpu.vector_store %arg11[%c32_76, %c0_77], %107 {strides = array<i32>} : memref<72x208xbf16, #tpu.memory_space<vmem>>, vector<8x208xbf16>,
    %c0_78 = arith.constant 0 : index
    %c17_79 = arith.constant 17 : index
    %109 = vector.load %arg9[%c0_78, %c17_79] : memref<8x240xbf16, #tpu.memory_space<vmem>>, vector<8x208xbf16>
    %c40 = arith.constant 40 : index
    %c0_80 = arith.constant 0 : index
    %110 = vector.load %arg11[%c40, %c0_80] : memref<72x208xbf16, #tpu.memory_space<vmem>>, vector<8x208xbf16>
    tpu.vector_store %arg11[%c40, %c0_80], %109 {strides = array<i32>} : memref<72x208xbf16, #tpu.memory_space<vmem>>, vector<8x208xbf16>,
    %c0_81 = arith.constant 0 : index
    %c25_82 = arith.constant 25 : index
    %111 = vector.load %arg9[%c0_81, %c25_82] : memref<8x240xbf16, #tpu.memory_space<vmem>>, vector<8x208xbf16>
    %c48 = arith.constant 48 : index
    %c0_83 = arith.constant 0 : index
    %112 = vector.load %arg11[%c48, %c0_83] : memref<72x208xbf16, #tpu.memory_space<vmem>>, vector<8x208xbf16>
    tpu.vector_store %arg11[%c48, %c0_83], %111 {strides = array<i32>} : memref<72x208xbf16, #tpu.memory_space<vmem>>, vector<8x208xbf16>,
    %c0_84 = arith.constant 0 : index
    %c26_85 = arith.constant 26 : index
    %113 = vector.load %arg9[%c0_84, %c26_85] : memref<8x240xbf16, #tpu.memory_space<vmem>>, vector<8x208xbf16>
    %c56 = arith.constant 56 : index
    %c0_86 = arith.constant 0 : index
    %114 = vector.load %arg11[%c56, %c0_86] : memref<72x208xbf16, #tpu.memory_space<vmem>>, vector<8x208xbf16>
    tpu.vector_store %arg11[%c56, %c0_86], %113 {strides = array<i32>} : memref<72x208xbf16, #tpu.memory_space<vmem>>, vector<8x208xbf16>,
    %c0_87 = arith.constant 0 : index
    %c27_88 = arith.constant 27 : index
    %115 = vector.load %arg9[%c0_87, %c27_88] : memref<8x240xbf16, #tpu.memory_space<vmem>>, vector<8x208xbf16>
    %c64 = arith.constant 64 : index
    %c0_89 = arith.constant 0 : index
    %116 = vector.load %arg11[%c64, %c0_89] : memref<72x208xbf16, #tpu.memory_space<vmem>>, vector<8x208xbf16>
    tpu.vector_store %arg11[%c64, %c0_89], %115 {strides = array<i32>} : memref<72x208xbf16, #tpu.memory_space<vmem>>, vector<8x208xbf16>,
    %c0_90 = arith.constant 0 : index
    %c0_91 = arith.constant 0 : index
    %117 = vector.load %arg5[%c0_90, %c0_91] : memref<8x72xbf16, #tpu.memory_space<vmem>>, vector<8x72xbf16>
    %c0_92 = arith.constant 0 : index
    %c0_93 = arith.constant 0 : index
    %118 = vector.load %arg11[%c0_92, %c0_93] : memref<72x208xbf16, #tpu.memory_space<vmem>>, vector<72x208xbf16>
    %cst_94 = arith.constant dense<0.000000e+00> : vector<8x208xf32>
    %119 = tpu.matmul %117, %118, %cst_94 {dimension_numbers = #tpu.dot_dimension_numbers<[1], [0], [0], [1], [0, 0, 1, 1], [], []>} : vector<8x72xbf16>, vector<72x208xbf16>, vector<8x208xf32> -> vector<8x208xf32>
    %c0_95 = arith.constant 0 : index
    %c0_96 = arith.constant 0 : index
    %120 = vector.load %arg6[%c0_95, %c0_96] : memref<8x1xf32, #tpu.memory_space<vmem>>, vector<8x1xf32>
    %121 = vector.broadcast %120 : vector<8x1xf32> to vector<8x208xf32>
    %122 = arith.addf %119, %121 : vector<8x208xf32>
    %cst_97 = arith.constant 0.000000e+00 : f32
    %123 = vector.broadcast %cst_97 : f32 to vector<8x208xf32>
    %124 = arith.cmpf ogt, %122, %123 : vector<8x208xf32>
    %cst_98 = arith.constant 0.00999999977 : f32
    %125 = vector.broadcast %cst_98 : f32 to vector<8x208xf32>
    %126 = arith.mulf %125, %122 : vector<8x208xf32>
    %127 = arith.select %124, %122, %126 : vector<8x208xi1>, vector<8x208xf32>
    %128 = vector.extract_strided_slice %127 {offsets = [0, 11], sizes = [8, 8], strides = [1, 1]} : vector<8x208xf32> to vector<8x8xf32>
    %c0_99 = arith.constant 0 : index
    %c0_100 = arith.constant 0 : index
    %c0_101 = arith.constant 0 : index
    %129 = vector.load %arg7[%c0_99, %c0_100, %c0_101] : memref<1x8x128xf32, #tpu.memory_space<vmem>>, vector<1x8x8xf32>
    %130 = vector.shape_cast %129 : vector<1x8x8xf32> to vector<8x8xf32>
    %131 = vector.shape_cast %128 : vector<8x8xf32> to vector<1x8x8xf32>
    tpu.vector_store %arg7[%c0_99, %c0_100, %c0_101], %131 {strides = array<i32>} : memref<1x8x128xf32, #tpu.memory_space<vmem>>, vector<1x8x8xf32>,
    %132 = vector.extract_strided_slice %127 {offsets = [0, 21], sizes = [8, 8], strides = [1, 1]} : vector<8x208xf32> to vector<8x8xf32>
    %c0_102 = arith.constant 0 : index
    %c0_103 = arith.constant 0 : index
    %c8_104 = arith.constant 8 : index
    %133 = vector.load %arg7[%c0_102, %c0_103, %c8_104] : memref<1x8x128xf32, #tpu.memory_space<vmem>>, vector<1x8x8xf32>
    %134 = vector.shape_cast %133 : vector<1x8x8xf32> to vector<8x8xf32>
    %135 = vector.shape_cast %132 : vector<8x8xf32> to vector<1x8x8xf32>
    tpu.vector_store %arg7[%c0_102, %c0_103, %c8_104], %135 {strides = array<i32>} : memref<1x8x128xf32, #tpu.memory_space<vmem>>, vector<1x8x8xf32>,
    %136 = vector.extract_strided_slice %127 {offsets = [0, 31], sizes = [8, 8], strides = [1, 1]} : vector<8x208xf32> to vector<8x8xf32>
    %c0_105 = arith.constant 0 : index
    %c0_106 = arith.constant 0 : index
    %c16_107 = arith.constant 16 : index
    %137 = vector.load %arg7[%c0_105, %c0_106, %c16_107] : memref<1x8x128xf32, #tpu.memory_space<vmem>>, vector<1x8x8xf32>
    %138 = vector.shape_cast %137 : vector<1x8x8xf32> to vector<8x8xf32>
    %139 = vector.shape_cast %136 : vector<8x8xf32> to vector<1x8x8xf32>
    tpu.vector_store %arg7[%c0_105, %c0_106, %c16_107], %139 {strides = array<i32>} : memref<1x8x128xf32, #tpu.memory_space<vmem>>, vector<1x8x8xf32>,
    %140 = vector.extract_strided_slice %127 {offsets = [0, 41], sizes = [8, 8], strides = [1, 1]} : vector<8x208xf32> to vector<8x8xf32>
    %c0_108 = arith.constant 0 : index
    %c0_109 = arith.constant 0 : index
    %c24_110 = arith.constant 24 : index
    %141 = vector.load %arg7[%c0_108, %c0_109, %c24_110] : memref<1x8x128xf32, #tpu.memory_space<vmem>>, vector<1x8x8xf32>
    %142 = vector.shape_cast %141 : vector<1x8x8xf32> to vector<8x8xf32>
    %143 = vector.shape_cast %140 : vector<8x8xf32> to vector<1x8x8xf32>
    tpu.vector_store %arg7[%c0_108, %c0_109, %c24_110], %143 {strides = array<i32>} : memref<1x8x128xf32, #tpu.memory_space<vmem>>, vector<1x8x8xf32>,
    %144 = vector.extract_strided_slice %127 {offsets = [0, 51], sizes = [8, 8], strides = [1, 1]} : vector<8x208xf32> to vector<8x8xf32>
    %c0_111 = arith.constant 0 : index
    %c0_112 = arith.constant 0 : index
    %c32_113 = arith.constant 32 : index
    %145 = vector.load %arg7[%c0_111, %c0_112, %c32_113] : memref<1x8x128xf32, #tpu.memory_space<vmem>>, vector<1x8x8xf32>
    %146 = vector.shape_cast %145 : vector<1x8x8xf32> to vector<8x8xf32>
    %147 = vector.shape_cast %144 : vector<8x8xf32> to vector<1x8x8xf32>
    tpu.vector_store %arg7[%c0_111, %c0_112, %c32_113], %147 {strides = array<i32>} : memref<1x8x128xf32, #tpu.memory_space<vmem>>, vector<1x8x8xf32>,
    %148 = vector.extract_strided_slice %127 {offsets = [0, 61], sizes = [8, 8], strides = [1, 1]} : vector<8x208xf32> to vector<8x8xf32>
    %c0_114 = arith.constant 0 : index
    %c0_115 = arith.constant 0 : index
    %c40_116 = arith.constant 40 : index
    %149 = vector.load %arg7[%c0_114, %c0_115, %c40_116] : memref<1x8x128xf32, #tpu.memory_space<vmem>>, vector<1x8x8xf32>
    %150 = vector.shape_cast %149 : vector<1x8x8xf32> to vector<8x8xf32>
    %151 = vector.shape_cast %148 : vector<8x8xf32> to vector<1x8x8xf32>
    tpu.vector_store %arg7[%c0_114, %c0_115, %c40_116], %151 {strides = array<i32>} : memref<1x8x128xf32, #tpu.memory_space<vmem>>, vector<1x8x8xf32>,
    %152 = vector.extract_strided_slice %127 {offsets = [0, 71], sizes = [8, 8], strides = [1, 1]} : vector<8x208xf32> to vector<8x8xf32>
    %c0_117 = arith.constant 0 : index
    %c0_118 = arith.constant 0 : index
    %c48_119 = arith.constant 48 : index
    %153 = vector.load %arg7[%c0_117, %c0_118, %c48_119] : memref<1x8x128xf32, #tpu.memory_space<vmem>>, vector<1x8x8xf32>
    %154 = vector.shape_cast %153 : vector<1x8x8xf32> to vector<8x8xf32>
    %155 = vector.shape_cast %152 : vector<8x8xf32> to vector<1x8x8xf32>
    tpu.vector_store %arg7[%c0_117, %c0_118, %c48_119], %155 {strides = array<i32>} : memref<1x8x128xf32, #tpu.memory_space<vmem>>, vector<1x8x8xf32>,
    %156 = vector.extract_strided_slice %127 {offsets = [0, 81], sizes = [8, 8], strides = [1, 1]} : vector<8x208xf32> to vector<8x8xf32>
    %c0_120 = arith.constant 0 : index
    %c0_121 = arith.constant 0 : index
    %c56_122 = arith.constant 56 : index
    %157 = vector.load %arg7[%c0_120, %c0_121, %c56_122] : memref<1x8x128xf32, #tpu.memory_space<vmem>>, vector<1x8x8xf32>
    %158 = vector.shape_cast %157 : vector<1x8x8xf32> to vector<8x8xf32>
    %159 = vector.shape_cast %156 : vector<8x8xf32> to vector<1x8x8xf32>
    tpu.vector_store %arg7[%c0_120, %c0_121, %c56_122], %159 {strides = array<i32>} : memref<1x8x128xf32, #tpu.memory_space<vmem>>, vector<1x8x8xf32>,
    %160 = vector.extract_strided_slice %127 {offsets = [0, 115], sizes = [8, 8], strides = [1, 1]} : vector<8x208xf32> to vector<8x8xf32>
    %c0_123 = arith.constant 0 : index
    %c0_124 = arith.constant 0 : index
    %c64_125 = arith.constant 64 : index
    %161 = vector.load %arg7[%c0_123, %c0_124, %c64_125] : memref<1x8x128xf32, #tpu.memory_space<vmem>>, vector<1x8x8xf32>
    %162 = vector.shape_cast %161 : vector<1x8x8xf32> to vector<8x8xf32>
    %163 = vector.shape_cast %160 : vector<8x8xf32> to vector<1x8x8xf32>
    tpu.vector_store %arg7[%c0_123, %c0_124, %c64_125], %163 {strides = array<i32>} : memref<1x8x128xf32, #tpu.memory_space<vmem>>, vector<1x8x8xf32>,
    %164 = vector.extract_strided_slice %127 {offsets = [0, 125], sizes = [8, 8], strides = [1, 1]} : vector<8x208xf32> to vector<8x8xf32>
    %c0_126 = arith.constant 0 : index
    %c0_127 = arith.constant 0 : index
    %c72 = arith.constant 72 : index
    %165 = vector.load %arg7[%c0_126, %c0_127, %c72] : memref<1x8x128xf32, #tpu.memory_space<vmem>>, vector<1x8x8xf32>
    %166 = vector.shape_cast %165 : vector<1x8x8xf32> to vector<8x8xf32>
    %167 = vector.shape_cast %164 : vector<8x8xf32> to vector<1x8x8xf32>
    tpu.vector_store %arg7[%c0_126, %c0_127, %c72], %167 {strides = array<i32>} : memref<1x8x128xf32, #tpu.memory_space<vmem>>, vector<1x8x8xf32>,
    %168 = vector.extract_strided_slice %127 {offsets = [0, 135], sizes = [8, 8], strides = [1, 1]} : vector<8x208xf32> to vector<8x8xf32>
    %c0_128 = arith.constant 0 : index
    %c0_129 = arith.constant 0 : index
    %c80 = arith.constant 80 : index
    %169 = vector.load %arg7[%c0_128, %c0_129, %c80] : memref<1x8x128xf32, #tpu.memory_space<vmem>>, vector<1x8x8xf32>
    %170 = vector.shape_cast %169 : vector<1x8x8xf32> to vector<8x8xf32>
    %171 = vector.shape_cast %168 : vector<8x8xf32> to vector<1x8x8xf32>
    tpu.vector_store %arg7[%c0_128, %c0_129, %c80], %171 {strides = array<i32>} : memref<1x8x128xf32, #tpu.memory_space<vmem>>, vector<1x8x8xf32>,
    %172 = vector.extract_strided_slice %127 {offsets = [0, 145], sizes = [8, 8], strides = [1, 1]} : vector<8x208xf32> to vector<8x8xf32>
    %c0_130 = arith.constant 0 : index
    %c0_131 = arith.constant 0 : index
    %c88 = arith.constant 88 : index
    %173 = vector.load %arg7[%c0_130, %c0_131, %c88] : memref<1x8x128xf32, #tpu.memory_space<vmem>>, vector<1x8x8xf32>
    %174 = vector.shape_cast %173 : vector<1x8x8xf32> to vector<8x8xf32>
    %175 = vector.shape_cast %172 : vector<8x8xf32> to vector<1x8x8xf32>
    tpu.vector_store %arg7[%c0_130, %c0_131, %c88], %175 {strides = array<i32>} : memref<1x8x128xf32, #tpu.memory_space<vmem>>, vector<1x8x8xf32>,
    %176 = vector.extract_strided_slice %127 {offsets = [0, 155], sizes = [8, 8], strides = [1, 1]} : vector<8x208xf32> to vector<8x8xf32>
    %c0_132 = arith.constant 0 : index
    %c0_133 = arith.constant 0 : index
    %c96 = arith.constant 96 : index
    %177 = vector.load %arg7[%c0_132, %c0_133, %c96] : memref<1x8x128xf32, #tpu.memory_space<vmem>>, vector<1x8x8xf32>
    %178 = vector.shape_cast %177 : vector<1x8x8xf32> to vector<8x8xf32>
    %179 = vector.shape_cast %176 : vector<8x8xf32> to vector<1x8x8xf32>
    tpu.vector_store %arg7[%c0_132, %c0_133, %c96], %179 {strides = array<i32>} : memref<1x8x128xf32, #tpu.memory_space<vmem>>, vector<1x8x8xf32>,
    %180 = vector.extract_strided_slice %127 {offsets = [0, 165], sizes = [8, 8], strides = [1, 1]} : vector<8x208xf32> to vector<8x8xf32>
    %c0_134 = arith.constant 0 : index
    %c0_135 = arith.constant 0 : index
    %c104 = arith.constant 104 : index
    %181 = vector.load %arg7[%c0_134, %c0_135, %c104] : memref<1x8x128xf32, #tpu.memory_space<vmem>>, vector<1x8x8xf32>
    %182 = vector.shape_cast %181 : vector<1x8x8xf32> to vector<8x8xf32>
    %183 = vector.shape_cast %180 : vector<8x8xf32> to vector<1x8x8xf32>
    tpu.vector_store %arg7[%c0_134, %c0_135, %c104], %183 {strides = array<i32>} : memref<1x8x128xf32, #tpu.memory_space<vmem>>, vector<1x8x8xf32>,
    %184 = vector.extract_strided_slice %127 {offsets = [0, 175], sizes = [8, 8], strides = [1, 1]} : vector<8x208xf32> to vector<8x8xf32>
    %c0_136 = arith.constant 0 : index
    %c0_137 = arith.constant 0 : index
    %c112 = arith.constant 112 : index
    %185 = vector.load %arg7[%c0_136, %c0_137, %c112] : memref<1x8x128xf32, #tpu.memory_space<vmem>>, vector<1x8x8xf32>
    %186 = vector.shape_cast %185 : vector<1x8x8xf32> to vector<8x8xf32>
    %187 = vector.shape_cast %184 : vector<8x8xf32> to vector<1x8x8xf32>
    tpu.vector_store %arg7[%c0_136, %c0_137, %c112], %187 {strides = array<i32>} : memref<1x8x128xf32, #tpu.memory_space<vmem>>, vector<1x8x8xf32>,
    %188 = vector.extract_strided_slice %127 {offsets = [0, 185], sizes = [8, 8], strides = [1, 1]} : vector<8x208xf32> to vector<8x8xf32>
    %c0_138 = arith.constant 0 : index
    %c0_139 = arith.constant 0 : index
    %c120 = arith.constant 120 : index
    %189 = vector.load %arg7[%c0_138, %c0_139, %c120] : memref<1x8x128xf32, #tpu.memory_space<vmem>>, vector<1x8x8xf32>
    %190 = vector.shape_cast %189 : vector<1x8x8xf32> to vector<8x8xf32>
    %191 = vector.shape_cast %188 : vector<8x8xf32> to vector<1x8x8xf32>
    tpu.vector_store %arg7[%c0_138, %c0_139, %c120], %191 {strides = array<i32>} : memref<1x8x128xf32, #tpu.memory_space<vmem>>, vector<1x8x8xf32>,
    return
  }
  func.func @transform_0(%arg0: i32) -> (i32, i32, i32, i32) {
    %c0_i32 = arith.constant 0 : i32
    %c0_i32_0 = arith.constant 0 : i32
    %c0_i32_1 = arith.constant 0 : i32
    %c0_i32_2 = arith.constant 0 : i32
    return %arg0, %c0_i32, %c0_i32_0, %c0_i32_1 : i32, i32, i32, i32
  }
  func.func @transform_1(%arg0: i32) -> (i32, i32) {
    %c0_i32 = arith.constant 0 : i32
    %c0_i32_0 = arith.constant 0 : i32
    %c0_i32_1 = arith.constant 0 : i32
    return %c0_i32, %c0_i32_0 : i32, i32
  }
  func.func @transform_2(%arg0: i32) -> (i32, i32) {
    %c0_i32 = arith.constant 0 : i32
    %c0_i32_0 = arith.constant 0 : i32
    %c0_i32_1 = arith.constant 0 : i32
    return %c0_i32, %c0_i32_0 : i32, i32
  }
  func.func @transform_3(%arg0: i32) -> (i32, i32) {
    %c0_i32 = arith.constant 0 : i32
    %c0_i32_0 = arith.constant 0 : i32
    %c0_i32_1 = arith.constant 0 : i32
    return %c0_i32, %c0_i32_0 : i32, i32
  }
  func.func @transform_4(%arg0: i32) -> (i32, i32) {
    %c0_i32 = arith.constant 0 : i32
    %c0_i32_0 = arith.constant 0 : i32
    %c0_i32_1 = arith.constant 0 : i32
    return %c0_i32, %c0_i32_0 : i32, i32
  }
  func.func @transform_5(%arg0: i32) -> (i32, i32) {
    %c0_i32 = arith.constant 0 : i32
    %c0_i32_0 = arith.constant 0 : i32
    %c0_i32_1 = arith.constant 0 : i32
    return %c0_i32, %c0_i32_0 : i32, i32
  }
  func.func @transform_6(%arg0: i32) -> (i32, i32, i32) {
    %c0_i32 = arith.constant 0 : i32
    %c0_i32_0 = arith.constant 0 : i32
    %c0_i32_1 = arith.constant 0 : i32
    return %arg0, %c0_i32, %c0_i32_0 : i32, i32, i32
  }
}

</mosaic_0001>

<llo_original>
// kernel: tpu_custom_call.1
$region0: #{tpu_custom_call.1}
  #allocation0 [shape = 'u32[]', space=smem, size = 0x4, offset = 0x4, fixed_abs, tag = 'smem constant byte address 0x4 - core index']
  #allocation1 [shape = 'u32[144,128]{1,0:T(1,128)}', space=vmem, size = 0x12000, scoped, tag = 'internal scratch']
  #allocation2 [shape = 'bf16[4,240]{1,0:T(4,128)(2,1)}', space=vmem, size = 0x800, scoped, tag = 'scratch operand']
  #allocation3 [shape = 'bf16[8,240]{1,0:T(8,128)(2,1)}', space=vmem, size = 0x1000, scoped, tag = 'scratch operand']
  #allocation4 [shape = 'bf16[36,208]{1,0:T(8,128)(2,1)}', space=vmem, size = 0x5000, scoped, tag = 'scratch operand']
  #allocation5 [shape = 'bf16[72,208]{1,0:T(8,128)(2,1)}', space=vmem, size = 0x9000, scoped, tag = 'scratch operand']
  %s0 = inlined_call_operand.hbm [shape: f32[2,4,4,64], index: 0, kind: input, shape index: {}]
  %s1 = inlined_call_operand.vmem [shape: f32[1,208], index: 1, kind: input, shape index: {}]
  %s2 = inlined_call_operand.vmem [shape: bf16[8,36], index: 2, kind: input, shape index: {}]
  %s3 = inlined_call_operand.vmem [shape: f32[8,1], index: 3, kind: input, shape index: {}]
  %s4 = inlined_call_operand.vmem [shape: bf16[8,72], index: 4, kind: input, shape index: {}]
  %s5 = inlined_call_operand.vmem [shape: f32[8,1], index: 5, kind: input, shape index: {}]
  %s6 = inlined_call_operand.hbm [shape: f32[1,8,128], index: 6, kind: output, shape index: {}]
  %s7 = sld [smem:[#allocation0]]
  $region38: #{tpu_custom_call.1} parent=0
    _
  %s9 = ssub.s32 1, %s7
  %s10 = scalar_select 0, %s9, %s7
  $region1: #{tpu_custom_call.1} parent=0
    #allocation6 [shape = 'u8[16384]{0}', space=vmem, size = 0x4000, scoped, tag = 'input window, operand 0, single buffered']
    #allocation7 [shape = 's32[1]{0}', space=sflag, size = 0x4, scoped, tag = 'scoped memory for tpu_custom_call.1']
    #allocation8 [shape = 's32[1]{0}', space=sflag, size = 0x4, scoped, tag = 'scoped memory for tpu_custom_call.1']
    #allocation9 [shape = 'u8[4096]{0}', space=vmem, size = 0x1000, scoped, tag = 'output window, operand 0, single buffered']
    %11 = vsyncpa [#allocation7], 0
    %12 = vsyncpa [#allocation8], 0
    // Predicated region
    $region2: #{tpu_custom_call.1} parent=1 // pred_check
      _
    $region3: #{tpu_custom_call.1} parent=1 // pred_check_branch
      %14 = sbr.rel (0) target = $region5
    $region4: #{tpu_custom_call.1} parent=1 // pred_region
      %s16 = ssub.s32 512, 512
      %17 = vsyncadd [#allocation7], %s16
      %s18 = sshll.u32 [#allocation6], 4
      %s19 = int_to_ptr.vmem [resolvable:$true] %s18
      %24 = dma.hbm_to_vmem [thread:$0]  %s0, 512, %s19, [#allocation7], 64, 64, 4
    $region5: #{tpu_custom_call.1} parent=1 // pred_fallthru
      _
    // Predicated region
    $region6: #{tpu_custom_call.1} parent=1 // pred_check
      _
    $region7: #{tpu_custom_call.1} parent=1 // pred_check_branch
      %26 = sbr.rel (0) target = $region9
    $region8: #{tpu_custom_call.1} parent=1 // pred_region
      _
    $region9: #{tpu_custom_call.1} parent=1 // pred_fallthru
      _
    // Predicated region
    $region10: #{tpu_custom_call.1} parent=1 // pred_check
      _
    $region11: #{tpu_custom_call.1} parent=1 // pred_check_branch
      %28 = sbr.rel (0) target = $region13
    $region12: #{tpu_custom_call.1} parent=1 // pred_region
      _
    $region13: #{tpu_custom_call.1} parent=1 // pred_fallthru
      _
    // Predicated region
    $region14: #{tpu_custom_call.1} parent=1 // pred_check
      _
    $region15: #{tpu_custom_call.1} parent=1 // pred_check_branch
      %30 = sbr.rel (0) target = $region17
    $region16: #{tpu_custom_call.1} parent=1 // pred_region
      _
    $region17: #{tpu_custom_call.1} parent=1 // pred_fallthru
      _
    // Predicated region
    $region18: #{tpu_custom_call.1} parent=1 // pred_check
      _
    $region19: #{tpu_custom_call.1} parent=1 // pred_check_branch
      %32 = sbr.rel (0) target = $region21
    $region20: #{tpu_custom_call.1} parent=1 // pred_region
      _
    $region21: #{tpu_custom_call.1} parent=1 // pred_fallthru
      _
    // Predicated region
    $region22: #{tpu_custom_call.1} parent=1 // pred_check
      _
    $region23: #{tpu_custom_call.1} parent=1 // pred_check_branch
      %34 = sbr.rel (0) target = $region25
    $region24: #{tpu_custom_call.1} parent=1 // pred_region
      _
    $region25: #{tpu_custom_call.1} parent=1 // pred_fallthru
      _
    // Predicated region
    $region26: #{tpu_custom_call.1} parent=1 // pred_check
      _
    $region27: #{tpu_custom_call.1} parent=1 // pred_check_branch
      %36 = sbr.rel (0) target = $region29
    $region28: #{tpu_custom_call.1} parent=1 // pred_region
      %37 = dma.done [#allocation7], 512
    $region29: #{tpu_custom_call.1} parent=1 // pred_fallthru
      _
    %vm39 = vcmask 1041408
    %vm40 = vcmask 912386
    %vm41 = vmor %vm40, %vm39
    %42 = vst.msk [vmem:[#allocation2] sm:$0xf] %vm41, 0
    %vm43 = vcmask 1043456
    %vm44 = vcmask 916484
    %vm45 = vmor %vm44, %vm43
    %46 = vst.msk [vmem:[#allocation3] sm:$0xff] %vm45, 0
    %v47 = vld [vmem:[#allocation6] sm:$0xf]
    %v48 = vld [vmem:[#allocation6 + $0x4] sm:$0xf]
    %v49 = vld [vmem:[#allocation6 + $0x8] sm:$0xf]
    %v50 = vld [vmem:[#allocation6 + $0xc] sm:$0xf]
    %v51 = vld [vmem:[#allocation6 + $0x10] sm:$0xf]
    %v52 = vld [vmem:[#allocation6 + $0x14] sm:$0xf]
    %v53 = vld [vmem:[#allocation6 + $0x18] sm:$0xf]
    %v54 = vld [vmem:[#allocation6 + $0x1c] sm:$0xf]
    %v55 = vmax.f32 %v47, %v48
    %v56 = vmax.f32 %v51, %v52
    %v57 = vmax.f32 %v49, %v50
    %v58 = vmax.f32 %v53, %v54
    %v59 = vmax.f32 %v55, %v57
    %v60 = vmax.f32 %v56, %v58
    %v61 = vpack.c.bf16 %v59, %v59
    %v62 = vpack.c.bf16 %v60, %v60
    %v65 = vunpack.c.l.s4 1983009808
    %v66 = vunpack.c.0.s8 %v65
    %v67 = vlaneseq
    %v68 = vshrl.u32 %v67, 7
    %v69 = vsub.s32 %v66, %v68
    %v70 = vrot.slane %v61, %v69
    %71 = vrot.lane.b32.xlu0 %v70, 27
    %v72 = vpop.permute.xlu0 %71
    %vm74 = vcmask 279768
    %75 = vst.msk [vmem:[#allocation2] sm:$0x3] %vm74, %v72
    %76 = vrot.lane.b32.xlu0 %v70, 29
    %v77 = vpop.permute.xlu0 %76
    %vm79 = vcmask 361768
    %80 = vst.msk [vmem:[#allocation2] sm:$0x3] %vm79, %v77
    %81 = vrot.lane.b32.xlu0 %v70, 31
    %v82 = vpop.permute.xlu0 %81
    %vm84 = vcmask 443768
    %85 = vst.msk [vmem:[#allocation2] sm:$0x3] %vm84, %v82
    %86 = vrot.lane.b32.xlu0 %v70, 33
    %v87 = vpop.permute.xlu0 %86
    %vm89 = vcmask 525768
    %90 = vst.msk [vmem:[#allocation2] sm:$0x3] %vm89, %v87
    %91 = vrot.lane.b32.xlu0 %v70, 35
    %v92 = vpop.permute.xlu0 %91
    %vm94 = vcmask 607768
    %95 = vst.msk [vmem:[#allocation2] sm:$0x3] %vm94, %v92
    %96 = vrot.lane.b32.xlu0 %v70, 37
    %v97 = vpop.permute.xlu0 %96
    %vm99 = vcmask 689768
    %100 = vst.msk [vmem:[#allocation2] sm:$0x3] %vm99, %v97
    %101 = vrot.lane.b32.xlu0 %v70, 39
    %v102 = vpop.permute.xlu0 %101
    %vm104 = vcmask 771768
    %105 = vst.msk [vmem:[#allocation2] sm:$0x3] %vm104, %v102
    %106 = vrot.lane.b32.xlu0 %v70, 41
    %v107 = vpop.permute.xlu0 %106
    %vm109 = vcmask 853768
    %110 = vst.msk [vmem:[#allocation2] sm:$0x3] %vm109, %v107
    %v113 = vunpack.c.l.s4 1983009808
    %v114 = vunpack.c.0.s8 %v113
    %v115 = vlaneseq
    %v116 = vshrl.u32 %v115, 7
    %v117 = vsub.s32 %v114, %v116
    %v118 = vrot.slane %v62, %v117
    %119 = vrot.lane.b32.xlu0 %v118, 3
    %v120 = vpop.permute.xlu0 %119
    %vm122 = vcmask 82968
    %123 = vst.msk [vmem:[#allocation2 + $0x2] sm:$0x3] %vm122, %v120
    %124 = vrot.lane.b32.xlu0 %v118, 5
    %v125 = vpop.permute.xlu0 %124
    %vm127 = vcmask 164968
    %128 = vst.msk [vmem:[#allocation2 + $0x2] sm:$0x3] %vm127, %v125
    %129 = vrot.lane.b32.xlu0 %v118, 7
    %v130 = vpop.permute.xlu0 %129
    %vm132 = vcmask 246968
    %133 = vst.msk [vmem:[#allocation2 + $0x2] sm:$0x3] %vm132, %v130
    %134 = vrot.lane.b32.xlu0 %v118, 9
    %v135 = vpop.permute.xlu0 %134
    %vm137 = vcmask 328968
    %138 = vst.msk [vmem:[#allocation2 + $0x2] sm:$0x3] %vm137, %v135
    %139 = vrot.lane.b32.xlu0 %v118, 11
    %v140 = vpop.permute.xlu0 %139
    %vm142 = vcmask 410968
    %143 = vst.msk [vmem:[#allocation2 + $0x2] sm:$0x3] %vm142, %v140
    %144 = vrot.lane.b32.xlu0 %v118, 13
    %v145 = vpop.permute.xlu0 %144
    %vm147 = vcmask 492968
    %148 = vst.msk [vmem:[#allocation2 + $0x2] sm:$0x3] %vm147, %v145
    %149 = vrot.lane.b32.xlu0 %v118, 15
    %v150 = vpop.permute.xlu0 %149
    %vm152 = vcmask 574968
    %153 = vst.msk [vmem:[#allocation2 + $0x2] sm:$0x3] %vm152, %v150
    %154 = vrot.lane.b32.xlu0 %v118, 17
    %v155 = vpop.permute.xlu0 %154
    %vm157 = vcmask 656968
    %158 = vst.msk [vmem:[#allocation2 + $0x2] sm:$0x3] %vm157, %v155
    %v159 = vld [vmem:[#allocation2] sm:$0xf]
    %v162 = vunpack.c.l.s4 1983009808
    %v163 = vunpack.c.0.s8 %v162
    %v164 = vlaneseq
    %v165 = vshrl.u32 %v164, 7
    %v166 = vsub.s32 %v163, %v165
    %v167 = vrot.slane %v159, %v166
    %168 = vrot.lane.b32.xlu0 %v167, 123
    %v169 = vpop.permute.xlu0 %168
    %v170 = vrot.slane %v169, 4
    %vm171 = vcmask 1006592
    %v172 = vsel %vm171, %v169, %v170
    %vm174 = vcmask 652292
    %vm175 = vmor %vm174, %vm39
    %176 = vst.msk [vmem:[#allocation4] sm:$0x33] %vm175, %v172
    %v177 = vld [vmem:[#allocation2] sm:$0xf]
    %v179 = vcombine.low %v177, %v177
    %v181 = vunpack.c.l.s4 1983009808
    %v182 = vunpack.c.0.s8 %v181
    %v183 = vlaneseq
    %v184 = vshrl.u32 %v183, 7
    %v185 = vsub.s32 %v182, %v184
    %v186 = vrot.slane %v179, %v185
    %187 = vrot.lane.b32.xlu0 %v186, 122
    %v188 = vpop.permute.xlu0 %187
    %v189 = vrot.slane %v188, 4
    %vm190 = vcmask 998400
    %v191 = vsel %vm190, %v188, %v189
    %vm193 = vcmask 1043458
    %vm194 = vcmask 654342
    %vm195 = vmor %vm194, %vm193
    %196 = vst.msk [vmem:[#allocation4] sm:$0xcc] %vm195, %v191
    %v197 = vld [vmem:[#allocation2] sm:$0xf]
    %v200 = vunpack.c.l.s4 1983009808
    %v201 = vunpack.c.0.s8 %v200
    %v202 = vlaneseq
    %v203 = vshrl.u32 %v202, 7
    %v204 = vsub.s32 %v201, %v203
    %v205 = vrot.slane %v197, %v204
    %206 = vrot.lane.b32.xlu0 %v205, 121
    %v207 = vpop.permute.xlu0 %206
    %v208 = vrot.slane %v207, 4
    %vm209 = vcmask 990208
    %v210 = vsel %vm209, %v207, %v208
    %212 = vst.msk [vmem:[#allocation4 + $0x8] sm:$0x33] %vm175, %v210
    %v213 = vld [vmem:[#allocation2] sm:$0xf]
    %v215 = vcombine.low %v213, %v213
    %v217 = vunpack.c.l.s4 1983009808
    %v218 = vunpack.c.0.s8 %v217
    %v219 = vlaneseq
    %v220 = vshrl.u32 %v219, 7
    %v221 = vsub.s32 %v218, %v220
    %v222 = vrot.slane %v215, %v221
    %223 = vrot.lane.b32.xlu0 %v222, 113
    %v224 = vpop.permute.xlu0 %223
    %v225 = vrot.slane %v224, 4
    %vm226 = vcmask 924672
    %v227 = vsel %vm226, %v224, %v225
    %229 = vst.msk [vmem:[#allocation4 + $0x8] sm:$0xcc] %vm195, %v227
    %v230 = vld [vmem:[#allocation2] sm:$0xf]
    %v233 = vunpack.c.l.s4 1983009808
    %v234 = vunpack.c.0.s8 %v233
    %v235 = vlaneseq
    %v236 = vshrl.u32 %v235, 7
    %v237 = vsub.s32 %v234, %v236
    %v238 = vrot.slane %v230, %v237
    %239 = vrot.lane.b32.xlu0 %v238, 112
    %v240 = vpop.permute.xlu0 %239
    %v241 = vrot.slane %v240, 4
    %vm242 = vcmask 916480
    %v243 = vsel %vm242, %v240, %v241
    %245 = vst.msk [vmem:[#allocation4 + $0x10] sm:$0x33] %vm175, %v243
    %v246 = vld [vmem:[#allocation2] sm:$0xf]
    %v248 = vcombine.low %v246, %v246
    %v250 = vunpack.c.l.s4 1983009808
    %v251 = vunpack.c.0.s8 %v250
    %v252 = vlaneseq
    %v253 = vshrl.u32 %v252, 7
    %v254 = vsub.s32 %v251, %v253
    %v255 = vrot.slane %v248, %v254
    %256 = vrot.lane.b32.xlu0 %v255, 111
    %v257 = vpop.permute.xlu0 %256
    %v258 = vrot.slane %v257, 4
    %vm259 = vcmask 908288
    %v260 = vsel %vm259, %v257, %v258
    %262 = vst.msk [vmem:[#allocation4 + $0x10] sm:$0xcc] %vm195, %v260
    %v263 = vld [vmem:[#allocation2] sm:$0xf]
    %v266 = vunpack.c.l.s4 1983009808
    %v267 = vunpack.c.0.s8 %v266
    %v268 = vlaneseq
    %v269 = vshrl.u32 %v268, 7
    %v270 = vsub.s32 %v267, %v269
    %v271 = vrot.slane %v263, %v270
    %272 = vrot.lane.b32.xlu0 %v271, 103
    %v273 = vpop.permute.xlu0 %272
    %v274 = vrot.slane %v273, 4
    %vm275 = vcmask 842752
    %v276 = vsel %vm275, %v273, %v274
    %278 = vst.msk [vmem:[#allocation4 + $0x18] sm:$0x33] %vm175, %v276
    %v279 = vld [vmem:[#allocation2] sm:$0xf]
    %v281 = vcombine.low %v279, %v279
    %v283 = vunpack.c.l.s4 1983009808
    %v284 = vunpack.c.0.s8 %v283
    %v285 = vlaneseq
    %v286 = vshrl.u32 %v285, 7
    %v287 = vsub.s32 %v284, %v286
    %v288 = vrot.slane %v281, %v287
    %289 = vrot.lane.b32.xlu0 %v288, 102
    %v290 = vpop.permute.xlu0 %289
    %v291 = vrot.slane %v290, 4
    %vm292 = vcmask 834560
    %v293 = vsel %vm292, %v290, %v291
    %295 = vst.msk [vmem:[#allocation4 + $0x18] sm:$0xcc] %vm195, %v293
    %v296 = vld [vmem:[#allocation2] sm:$0xf]
    %v299 = vunpack.c.l.s4 1983009808
    %v300 = vunpack.c.0.s8 %v299
    %v301 = vlaneseq
    %v302 = vshrl.u32 %v301, 7
    %v303 = vsub.s32 %v300, %v302
    %v304 = vrot.slane %v296, %v303
    %305 = vrot.lane.b32.xlu0 %v304, 101
    %v306 = vpop.permute.xlu0 %305
    %v307 = vrot.slane %v306, 4
    %vm308 = vcmask 826368
    %v309 = vsel %vm308, %v306, %v307
    %311 = vst.msk [vmem:[#allocation4 + $0x20] sm:$0x33] %vm175, %v309
    %v312 = vld [vmem:[%s2] sm:$0xf]
    %v313 = vld [vmem:[#allocation4] sm:$0xff]
    %v314 = vld [vmem:[#allocation4 + $0x8] sm:$0xff]
    %v315 = vld [vmem:[#allocation4 + $0x10] sm:$0xff]
    %v316 = vld [vmem:[#allocation4 + $0x18] sm:$0xff]
    %v317 = vld [vmem:[#allocation4 + $0x20] sm:$0x33]
    %v318 = vld [vmem:[%s3] sm:$0xff]
    %320 = vset.pattern.permute.xlu0 0
    %321 = vperm.xlu0 %320, %v318
    %v322 = vpop.permute.xlu0 %321
    %v329 = vunpack.c.l.b16 %v313
    %v330 = vunpack.c.h.b16 %v313
    %v331 = vunpack.c.l.b16 %v314
    %v332 = vunpack.c.h.b16 %v314
    %v333 = vunpack.c.l.b16 %v315
    %v334 = vunpack.c.h.b16 %v315
    %v335 = vunpack.c.l.b16 %v316
    %v336 = vunpack.c.h.b16 %v316
    %v337 = vunpack.c.l.b16 %v317
    %v338 = vunpack.c.h.b16 %v317
    %v339 = vpack.c.b16 %v331, %v329
    %v340 = vpack.c.b16 %v332, %v330
    %v341 = vpack.c.b16 %v335, %v333
    %v342 = vpack.c.b16 %v336, %v334
    %v343 = vpack.c.b16 %v337, %v337
    %v344 = vpack.c.b16 %v338, %v338
    %vm349 = vcmask 293888
    %v351 = vsel %vm349, %v312, 0
    %v354 = vsel %vm39, %v343, 0
    %v357 = vsel %vm39, %v344, 0
    %359 = vmatprep.subr.bf16.mxu0 %v340
    %360 = vmatpush1.bf16.msra.mxu0 %v339
    %361 = vmatprep.subr.bf16.mxu0 %v342
    %362 = vmatpush1.bf16.msra.mxu0 %v341
    %363 = vmatprep.subr.bf16.mxu0 %v357
    %364 = vmatpush1.bf16.msra.mxu0 %v354
    %365 = vmatprep.subr.bf16.mxu0 0
    %366 = vmatpush1.bf16.msra.mxu0 0
    %367 = vmatprep.subr.bf16.mxu0 0
    %368 = vmatpush1.bf16.msra.mxu0 0
    %369 = vmatprep.subr.bf16.mxu0 0
    %370 = vmatpush1.bf16.msra.mxu0 0
    %371 = vmatprep.subr.bf16.mxu0 0
    %372 = vmatpush1.bf16.msra.mxu0 0
    %373 = vmatprep.subr.bf16.mxu0 0
    %374 = vmatpush1.bf16.msra.mxu0 0
    %375 = vmatprep.subr.bf16.mxu0 0
    %376 = vmatpush1.bf16.msra.mxu0 0
    %377 = vmatprep.subr.bf16.mxu0 0
    %378 = vmatpush1.bf16.msra.mxu0 0
    %379 = vmatprep.subr.bf16.mxu0 0
    %380 = vmatpush1.bf16.msra.mxu0 0
    %381 = vmatprep.subr.bf16.mxu0 0
    %382 = vmatpush1.bf16.msra.mxu0 0
    %383 = vmatprep.subr.bf16.mxu0 0
    %384 = vmatpush1.bf16.msra.mxu0 0
    %385 = vmatprep.subr.bf16.mxu0 0
    %386 = vmatpush1.bf16.msra.mxu0 0
    %387 = vmatprep.subr.bf16.mxu0 0
    %388 = vmatpush1.bf16.msra.mxu0 0
    %389 = vmatprep.subr.bf16.mxu0 0
    %390 = vmatpush1.bf16.msra.mxu0 0
    %391 = vmatprep.mubr.bf16.mxu0 0
    %392 = vmatmul.mubr.bf16.gmra.mrb[0].mxu0 %v351
    %v393 = vpop.f32.mrb[0].mxu0
    %v394 = vadd.f32 %v322, %v393
    %v395 = vpop.f32.mrb[0].mxu0
    %v396 = vadd.f32 %v322, %v395
    %v397 = vpop.f32.mrb[0].mxu0
    %v398 = vpop.f32.mrb[0].mxu0
    %399 = vdwg.mxu0
    %vm400 = vcmp.gt.f32.partialorder %v394, 0.0
    %vm401 = vcmp.gt.f32.partialorder %v396, 0.0
    %v402 = vmul.f32 %v394, 0.01
    %v403 = vmul.f32 %v396, 0.01
    %v404 = vsel %vm400, %v394, %v402
    %v405 = vsel %vm401, %v396, %v403
    %v406 = vld [vmem:[%s1] sm:$0x3]
    %v408 = vlaneseq
    %v409 = vshrl.u32 %v408, 7
    %v410 = vsub.s32 0, %v409
    %v411 = vrot.slane %v406, %v410
    %v412 = vlaneseq
    %v413 = vshrl.u32 %v412, 7
    %v414 = vsub.s32 1, %v413
    %v415 = vrot.slane %v406, %v414
    %v418 = vmul.f32 %v404, %v411
    %v419 = vmul.f32 %v405, %v415
    %v420 = vpack.c.bf16 %v418, %v418
    %v421 = vpack.c.bf16 %v419, %v419
    %v424 = vunpack.c.l.b16 %v420
    %v425 = vunpack.c.l.b16 %v421
    %v426 = vpack.c.b16 %v425, %v424
    %427 = vrot.lane.b32.xlu0 %v426, 16
    %v428 = vpop.permute.xlu0 %427
    %v429 = vrot.slane %v428, 4
    %vm430 = vcmask 130048
    %v431 = vsel %vm430, %v429, %v428
    %vm433 = vcmask 1043584
    %vm434 = vcmask 785412
    %vm435 = vmor %vm434, %vm433
    %436 = vst.msk [vmem:[#allocation3] sm:$0xff] %vm435, %v431
    %v437 = vld [vmem:[#allocation3] sm:$0xff]
    %439 = vrot.lane.b32.xlu0 %v437, 123
    %v440 = vpop.permute.xlu0 %439
    %v441 = vrot.slane %v440, 4
    %v442 = vsel %vm171, %v440, %v441
    %vm444 = vcmask 654340
    %vm445 = vmor %vm444, %vm43
    %446 = vst.msk [vmem:[#allocation5] sm:$0xff] %vm445, %v442
    %v447 = vld [vmem:[#allocation3] sm:$0xff]
    %449 = vrot.lane.b32.xlu0 %v447, 122
    %v450 = vpop.permute.xlu0 %449
    %v451 = vrot.slane %v450, 4
    %v452 = vsel %vm190, %v450, %v451
    %454 = vst.msk [vmem:[#allocation5 + $0x8] sm:$0xff] %vm445, %v452
    %v455 = vld [vmem:[#allocation3] sm:$0xff]
    %457 = vrot.lane.b32.xlu0 %v455, 121
    %v458 = vpop.permute.xlu0 %457
    %v459 = vrot.slane %v458, 4
    %v460 = vsel %vm209, %v458, %v459
    %462 = vst.msk [vmem:[#allocation5 + $0x10] sm:$0xff] %vm445, %v460
    %v463 = vld [vmem:[#allocation3] sm:$0xff]
    %465 = vrot.lane.b32.xlu0 %v463, 113
    %v466 = vpop.permute.xlu0 %465
    %v467 = vrot.slane %v466, 4
    %v468 = vsel %vm226, %v466, %v467
    %470 = vst.msk [vmem:[#allocation5 + $0x18] sm:$0xff] %vm445, %v468
    %v471 = vld [vmem:[#allocation3] sm:$0xff]
    %473 = vrot.lane.b32.xlu0 %v471, 112
    %v474 = vpop.permute.xlu0 %473
    %v475 = vrot.slane %v474, 4
    %v476 = vsel %vm242, %v474, %v475
    %478 = vst.msk [vmem:[#allocation5 + $0x20] sm:$0xff] %vm445, %v476
    %v479 = vld [vmem:[#allocation3] sm:$0xff]
    %481 = vrot.lane.b32.xlu0 %v479, 111
    %v482 = vpop.permute.xlu0 %481
    %v483 = vrot.slane %v482, 4
    %v484 = vsel %vm259, %v482, %v483
    %486 = vst.msk [vmem:[#allocation5 + $0x28] sm:$0xff] %vm445, %v484
    %v487 = vld [vmem:[#allocation3] sm:$0xff]
    %489 = vrot.lane.b32.xlu0 %v487, 103
    %v490 = vpop.permute.xlu0 %489
    %v491 = vrot.slane %v490, 4
    %v492 = vsel %vm275, %v490, %v491
    %494 = vst.msk [vmem:[#allocation5 + $0x30] sm:$0xff] %vm445, %v492
    %v495 = vld [vmem:[#allocation3] sm:$0xff]
    %497 = vrot.lane.b32.xlu0 %v495, 102
    %v498 = vpop.permute.xlu0 %497
    %v499 = vrot.slane %v498, 4
    %v500 = vsel %vm292, %v498, %v499
    %502 = vst.msk [vmem:[#allocation5 + $0x38] sm:$0xff] %vm445, %v500
    %v503 = vld [vmem:[#allocation3] sm:$0xff]
    %505 = vrot.lane.b32.xlu0 %v503, 101
    %v506 = vpop.permute.xlu0 %505
    %v507 = vrot.slane %v506, 4
    %v508 = vsel %vm308, %v506, %v507
    %510 = vst.msk [vmem:[#allocation5 + $0x40] sm:$0xff] %vm445, %v508
    %v511 = vld [vmem:[%s4] sm:$0xf]
    %v512 = vld [vmem:[#allocation5] sm:$0xff]
    %v513 = vld [vmem:[#allocation5 + $0x8] sm:$0xff]
    %v514 = vld [vmem:[#allocation5 + $0x10] sm:$0xff]
    %v515 = vld [vmem:[#allocation5 + $0x18] sm:$0xff]
    %v516 = vld [vmem:[#allocation5 + $0x20] sm:$0xff]
    %v517 = vld [vmem:[#allocation5 + $0x28] sm:$0xff]
    %v518 = vld [vmem:[#allocation5 + $0x30] sm:$0xff]
    %v519 = vld [vmem:[#allocation5 + $0x38] sm:$0xff]
    %v520 = vld [vmem:[#allocation5 + $0x40] sm:$0xff]
    %v521 = vld [vmem:[%s5] sm:$0xff]
    %523 = vset.pattern.permute.xlu0 0
    %524 = vperm.xlu0 %523, %v521
    %v525 = vpop.permute.xlu0 %524
    %v536 = vunpack.c.l.b16 %v512
    %v537 = vunpack.c.h.b16 %v512
    %v538 = vunpack.c.l.b16 %v513
    %v539 = vunpack.c.h.b16 %v513
    %v540 = vunpack.c.l.b16 %v514
    %v541 = vunpack.c.h.b16 %v514
    %v542 = vunpack.c.l.b16 %v515
    %v543 = vunpack.c.h.b16 %v515
    %v544 = vunpack.c.l.b16 %v516
    %v545 = vunpack.c.h.b16 %v516
    %v546 = vunpack.c.l.b16 %v517
    %v547 = vunpack.c.h.b16 %v517
    %v548 = vunpack.c.l.b16 %v518
    %v549 = vunpack.c.h.b16 %v518
    %v550 = vunpack.c.l.b16 %v519
    %v551 = vunpack.c.h.b16 %v519
    %v552 = vunpack.c.l.b16 %v520
    %v553 = vunpack.c.h.b16 %v520
    %v554 = vpack.c.b16 %v538, %v536
    %v555 = vpack.c.b16 %v539, %v537
    %v556 = vpack.c.b16 %v542, %v540
    %v557 = vpack.c.b16 %v543, %v541
    %v558 = vpack.c.b16 %v546, %v544
    %v559 = vpack.c.b16 %v547, %v545
    %v560 = vpack.c.b16 %v550, %v548
    %v561 = vpack.c.b16 %v551, %v549
    %v562 = vpack.c.b16 %v552, %v552
    %v563 = vpack.c.b16 %v553, %v553
    %vm572 = vcmask 588800
    %v574 = vsel %vm572, %v511, 0
    %v577 = vsel %vm43, %v562, 0
    %v580 = vsel %vm43, %v563, 0
    %582 = vmatprep.subr.bf16.mxu0 %v555
    %583 = vmatpush1.bf16.msra.mxu0 %v554
    %584 = vmatprep.subr.bf16.mxu0 %v557
    %585 = vmatpush1.bf16.msra.mxu0 %v556
    %586 = vmatprep.subr.bf16.mxu0 %v559
    %587 = vmatpush1.bf16.msra.mxu0 %v558
    %588 = vmatprep.subr.bf16.mxu0 %v561
    %589 = vmatpush1.bf16.msra.mxu0 %v560
    %590 = vmatprep.subr.bf16.mxu0 %v580
    %591 = vmatpush1.bf16.msra.mxu0 %v577
    %592 = vmatprep.subr.bf16.mxu0 0
    %593 = vmatpush1.bf16.msra.mxu0 0
    %594 = vmatprep.subr.bf16.mxu0 0
    %595 = vmatpush1.bf16.msra.mxu0 0
    %596 = vmatprep.subr.bf16.mxu0 0
    %597 = vmatpush1.bf16.msra.mxu0 0
    %598 = vmatprep.subr.bf16.mxu0 0
    %599 = vmatpush1.bf16.msra.mxu0 0
    %600 = vmatprep.subr.bf16.mxu0 0
    %601 = vmatpush1.bf16.msra.mxu0 0
    %602 = vmatprep.subr.bf16.mxu0 0
    %603 = vmatpush1.bf16.msra.mxu0 0
    %604 = vmatprep.subr.bf16.mxu0 0
    %605 = vmatpush1.bf16.msra.mxu0 0
    %606 = vmatprep.subr.bf16.mxu0 0
    %607 = vmatpush1.bf16.msra.mxu0 0
    %608 = vmatprep.subr.bf16.mxu0 0
    %609 = vmatpush1.bf16.msra.mxu0 0
    %610 = vmatprep.subr.bf16.mxu0 0
    %611 = vmatpush1.bf16.msra.mxu0 0
    %612 = vmatprep.subr.bf16.mxu0 0
    %613 = vmatpush1.bf16.msra.mxu0 0
    %614 = vmatprep.mubr.bf16.mxu0 0
    %615 = vmatmul.mubr.bf16.gmra.mrb[0].mxu0 %v574
    %v616 = vpop.f32.mrb[0].mxu0
    %v617 = vadd.f32 %v525, %v616
    %v618 = vpop.f32.mrb[0].mxu0
    %v619 = vadd.f32 %v525, %v618
    %v620 = vpop.f32.mrb[0].mxu0
    %v621 = vpop.f32.mrb[0].mxu0
    %622 = vdwg.mxu0
    %vm623 = vcmp.gt.f32.partialorder %v617, 0.0
    %vm624 = vcmp.gt.f32.partialorder %v619, 0.0
    %v625 = vmul.f32 %v617, 0.01
    %v626 = vmul.f32 %v619, 0.01
    %v627 = vsel %vm623, %v617, %v625
    %v628 = vsel %vm624, %v619, %v626
    %630 = vrot.lane.b32.xlu0 %v627, 117
    %v631 = vpop.permute.xlu0 %630
    %vm633 = vcmask 64512
    %634 = vst.msk [vmem:[#allocation9] sm:$0xff] %vm633, %v631
    %635 = vrot.lane.b32.xlu0 %v627, 115
    %v636 = vpop.permute.xlu0 %635
    %vm638 = vcmask 130112
    %639 = vst.msk [vmem:[#allocation9] sm:$0xff] %vm638, %v636
    %640 = vrot.lane.b32.xlu0 %v627, 113
    %v641 = vpop.permute.xlu0 %640
    %vm643 = vcmask 195712
    %644 = vst.msk [vmem:[#allocation9] sm:$0xff] %vm643, %v641
    %645 = vrot.lane.b32.xlu0 %v627, 111
    %v646 = vpop.permute.xlu0 %645
    %vm648 = vcmask 261312
    %649 = vst.msk [vmem:[#allocation9] sm:$0xff] %vm648, %v646
    %650 = vrot.lane.b32.xlu0 %v627, 109
    %v651 = vpop.permute.xlu0 %650
    %vm653 = vcmask 326912
    %654 = vst.msk [vmem:[#allocation9] sm:$0xff] %vm653, %v651
    %655 = vrot.lane.b32.xlu0 %v627, 107
    %v656 = vpop.permute.xlu0 %655
    %vm658 = vcmask 392512
    %659 = vst.msk [vmem:[#allocation9] sm:$0xff] %vm658, %v656
    %660 = vrot.lane.b32.xlu0 %v627, 105
    %v661 = vpop.permute.xlu0 %660
    %vm663 = vcmask 458112
    %664 = vst.msk [vmem:[#allocation9] sm:$0xff] %vm663, %v661
    %665 = vrot.lane.b32.xlu0 %v627, 103
    %v666 = vpop.permute.xlu0 %665
    %vm668 = vcmask 523712
    %669 = vst.msk [vmem:[#allocation9] sm:$0xff] %vm668, %v666
    %670 = vrot.lane.b32.xlu0 %v627, 77
    %v671 = vpop.permute.xlu0 %670
    %vm673 = vcmask 589312
    %674 = vst.msk [vmem:[#allocation9] sm:$0xff] %vm673, %v671
    %676 = vrot.lane.b32.xlu0 %v627, 75
    %v677 = vpop.permute.xlu0 %676
    %678 = vrot.lane.b32.xlu0 %v628, 75
    %v679 = vpop.permute.xlu0 %678
    %vm680 = vcmask 613376
    %v681 = vsel %vm680, %v677, %v679
    %vm683 = vcmask 654912
    %684 = vst.msk [vmem:[#allocation9] sm:$0xff] %vm683, %v681
    %685 = vrot.lane.b32.xlu0 %v628, 73
    %v686 = vpop.permute.xlu0 %685
    %vm688 = vcmask 720512
    %689 = vst.msk [vmem:[#allocation9] sm:$0xff] %vm688, %v686
    %690 = vrot.lane.b32.xlu0 %v628, 71
    %v691 = vpop.permute.xlu0 %690
    %vm693 = vcmask 786112
    %694 = vst.msk [vmem:[#allocation9] sm:$0xff] %vm693, %v691
    %695 = vrot.lane.b32.xlu0 %v628, 69
    %v696 = vpop.permute.xlu0 %695
    %vm698 = vcmask 851712
    %699 = vst.msk [vmem:[#allocation9] sm:$0xff] %vm698, %v696
    %700 = vrot.lane.b32.xlu0 %v628, 67
    %v701 = vpop.permute.xlu0 %700
    %vm703 = vcmask 917312
    %704 = vst.msk [vmem:[#allocation9] sm:$0xff] %vm703, %v701
    %705 = vrot.lane.b32.xlu0 %v628, 65
    %v706 = vpop.permute.xlu0 %705
    %vm708 = vcmask 982912
    %709 = vst.msk [vmem:[#allocation9] sm:$0xff] %vm708, %v706
    %710 = vrot.lane.b32.xlu0 %v628, 63
    %v711 = vpop.permute.xlu0 %710
    %vm713 = vcmask 1048512
    %714 = vst.msk [vmem:[#allocation9] sm:$0xff] %vm713, %v711
    // Predicated region
    $region30: #{tpu_custom_call.1} parent=1 // pred_check
      _
    $region31: #{tpu_custom_call.1} parent=1 // pred_check_branch
      %716 = sbr.rel (0) target = $region33
    $region32: #{tpu_custom_call.1} parent=1 // pred_region
      %s718 = ssub.s32 128, 128
      %719 = vsyncadd [#allocation8], %s718
      %s721 = sshll.u32 [#allocation9], 4
      %s722 = int_to_ptr.vmem [resolvable:$true] %s721
      %724 = dma.vmem_to_hbm [thread:$0]  %s722, 128, %s6, [#allocation8]
    $region33: #{tpu_custom_call.1} parent=1 // pred_fallthru
      _
    // Predicated region
    $region34: #{tpu_custom_call.1} parent=1 // pred_check
      _
    $region35: #{tpu_custom_call.1} parent=1 // pred_check_branch
      %726 = sbr.rel (0) target = $region37
    $region36: #{tpu_custom_call.1} parent=1 // pred_region
      %727 = dma.done [#allocation8], 128
    $region37: #{tpu_custom_call.1} parent=1 // pred_fallthru
      _
    %728 = vsyncpa [#allocation7], 1
    %729 = vsyncpa [#allocation8], 1

</llo_original>
